<compile_context>
chip_gen: v6e
topology: v6e:2x2x1
jax: 0.10.0
libtpu: 0.0.40
codegen_flags: <defaults>
</compile_context>

<pallas_src>
import functools

import jax
import jax.numpy as jnp
from jax.experimental import pallas as pl
from jax.experimental.pallas import tpu as pltpu

P = 128           # padded lane width for every layer (all real dims here are <= 128)
N_LAYERS = 6


def mlp_kernel(x_ref, w_ref, b_ref, o_ref, *, n_in):
    """x_ref: [TB, n_in] (any float dtype), w_ref: [6, P, P] bf16, b_ref: [6, 1, P] f32,
    o_ref: [TB, P] bf16."""
    h = x_ref[...].astype(jnp.bfloat16)                       # [TB, n_in]
    # fc1: narrow contraction against the first n_in rows of the padded weight tile.
    w0 = w_ref[0][:n_in, :]                                   # [n_in, P] bf16 (static slice)
    acc = jnp.dot(h, w0, preferred_element_type=jnp.float32) + b_ref[0]
    h = jnp.maximum(acc, 0.0).astype(jnp.bfloat16)
    # fc2..fc5: matmul + bias + ReLU (f32 epilogue, bf16 back to the MXU)
    for l in range(1, N_LAYERS - 1):
        acc = jnp.dot(h, w_ref[l], preferred_element_type=jnp.float32) + b_ref[l]
        h = jnp.maximum(acc, 0.0).astype(jnp.bfloat16)
    # output layer: no ReLU; store bf16 to halve HBM writeback (lane-dense 128-wide store).
    o_ref[...] = (jnp.dot(h, w_ref[N_LAYERS - 1], preferred_element_type=jnp.float32)
                  + b_ref[N_LAYERS - 1]).astype(jnp.bfloat16)


def init_params(key, n_features, n_output):
    """Mimics nn.Linear init U(-1/sqrt(fan_in), 1/sqrt(fan_in)).
    Weights stored transposed as [in, out]; biases as [out]."""
    dims = [n_features, 24, 32, 100, 100, 32, n_output]
    params = []
    for i in range(N_LAYERS):
        fan_in, fan_out = dims[i], dims[i + 1]
        key, kw, kb = jax.random.split(key, 3)
        bound = 1.0 / (fan_in ** 0.5)
        w = jax.random.uniform(kw, (fan_in, fan_out), jnp.float32, -bound, bound)
        b = jax.random.uniform(kb, (fan_out,), jnp.float32, -bound, bound)
        params.append((w, b))
    return params


def _round_up(x, m):
    return ((x + m - 1) // m) * m


def pack_params(params):
    """Pack the 6 (w, b) pairs into two zero-padded slabs (padding stays exactly zero)."""
    w_slab = jnp.zeros((N_LAYERS, P, P), jnp.bfloat16)
    b_slab = jnp.zeros((N_LAYERS, 1, P), jnp.float32)
    for l, (w, b) in enumerate(params):
        fi, fo = w.shape
        assert fi <= P and fo <= P, "this kernel assumes every layer dim <= 128"
        w_slab = w_slab.at[l, :fi, :fo].set(w.astype(jnp.bfloat16))
        b_slab = b_slab.at[l, 0, :fo].set(b.astype(jnp.float32))
    return w_slab, b_slab


_TILE_CANDIDATES = (2048, 1024, 512, 256, 128)


def _choose_tile(B):
    """Pick (TB, B_pad): the largest candidate tile with <= ~12.5% batch-padding waste,
    amortizing the ~0.35us/step grid overhead. When a single tile would cover the whole
    batch, split it in two so both v7x TensorCores get a grid step. Small batches run as
    one 8-row-aligned tile (launch/weight-DMA dominated anyway)."""
    B8 = _round_up(B, 8)
    for tb in _TILE_CANDIDATES:
        if tb > B8:
            continue
        b_pad = _round_up(B8, tb)
        if (b_pad - B8) * 8 <= b_pad:              # padded rows <= 12.5%
            if b_pad // tb < 2 and b_pad >= 256:   # one big step -> split for megacore
                tb = _round_up(-(-b_pad // 2), 8)
                b_pad = _round_up(B8, tb)
            return tb, b_pad
    if B8 >= 256:                                  # unlucky mid-size batch: two ~half tiles
        tb = _round_up(-(-B8 // 2), 8)
        return tb, _round_up(B8, tb)
    return B8, B8


@functools.partial(jax.jit, static_argnames=("n_output",))
def mlp_forward(x, w_slab, b_slab, *, n_output):
    """x: [B, ...] -> flattened to [B, n_features] (matches x.flatten(start_dim=1))."""
    B = x.shape[0]
    x2d = x.reshape(B, -1)
    n_features = x2d.shape[1]
    assert n_features <= P, "this kernel assumes n_features <= 128"

    # Only pad features to a multiple of 8 (not 128) and batch rows to the tile size.
    nf_pad = max(_round_up(n_features, 8), 8)
    TB, B_pad = _choose_tile(B)
    pad_b, pad_f = B_pad - B, nf_pad - n_features
    if pad_b or pad_f:
        x2d = jnp.pad(x2d, ((0, pad_b), (0, pad_f)))   # single fused pad; often a no-op

    out = pl.pallas_call(
        functools.partial(mlp_kernel, n_in=nf_pad),
        out_shape=jax.ShapeDtypeStruct((B_pad, P), jnp.bfloat16),
        grid=(B_pad // TB,),
        in_specs=[
            pl.BlockSpec((TB, nf_pad), lambda i: (i, 0)),         # x: narrow, tiled over batch
            pl.BlockSpec((N_LAYERS, P, P), lambda i: (0, 0, 0)),  # weights: VMEM-resident
            pl.BlockSpec((N_LAYERS, 1, P), lambda i: (0, 0, 0)),  # biases: VMEM-resident
        ],
        out_specs=pl.BlockSpec((TB, P), lambda i: (i, 0)),
        compiler_params=pltpu.CompilerParams(
            dimension_semantics=("parallel",)),                   # shards batch steps on v7x
    )(x2d, w_slab, b_slab)

    # NOTE: rows B..B_pad and lanes n_output..P of `out` contain padding garbage; slice them off.
    return out[:B, :n_output].astype(jnp.float32)


def mlp_reference(x, params):
    """Pure-JAX f32 reference of the PyTorch forward."""
    h = x.reshape(x.shape[0], -1).astype(jnp.float32)
    for l, (w, b) in enumerate(params):
        h = jnp.dot(h, w) + b
        if l < N_LAYERS - 1:
            h = jnp.maximum(h, 0.0)
    return h


if __name__ == "__main__":
    # Example: state observations of shape [B, 4, 4] -> n_features = 16, n_output = 4 actions.
    B, H, W = 8, 4, 4
    n_features = H * W
    n_output = 4

    key = jax.random.PRNGKey(0)
    kx, kp = jax.random.split(key)
    x = jax.random.normal(kx, (B, H, W), jnp.float32)
    params = init_params(kp, n_features, n_output)
    w_slab, b_slab = pack_params(params)

    out = mlp_forward(x, w_slab, b_slab, n_output=n_output)
    out = jax.block_until_ready(out)
    assert out.shape == (B, n_output), out.shape

    ref = mlp_reference(x, params)
    assert jnp.all(jnp.isfinite(out))
    assert jnp.allclose(out, ref, atol=5e-2, rtol=5e-2), (out, ref)

    # Also exercise a large-batch, non-multiple-of-tile path (grid > 1, adaptive TB).
    xb = jax.random.normal(jax.random.PRNGKey(1), (1500, H, W), jnp.float32)
    outb = jax.block_until_ready(mlp_forward(xb, w_slab, b_slab, n_output=n_output))
    refb = mlp_reference(xb, params)
    assert outb.shape == (1500, n_output)
    assert jnp.allclose(outb, refb, atol=5e-2, rtol=5e-2)

    print("KERNEL_OK")
</pallas_src>

<mosaic_0001>
module attributes {stable_mosaic.version = 11 : i64} {
  func.func @mlp_kernel(%arg0: i32, %arg1: memref<8x16xf32, #tpu.memory_space<vmem>>, %arg2: memref<6x128x128xbf16, #tpu.memory_space<vmem>>, %arg3: memref<6x1x128xf32, #tpu.memory_space<vmem>>, %arg4: memref<8x128xbf16, #tpu.memory_space<vmem>>) attributes {dimension_semantics = [#tpu.dimension_semantics<parallel>], iteration_bounds = array<i64: 1>, scalar_prefetch = 0 : i64, scratch_operands = 0 : i64, tpu.core_type = #tpu.core_type<tc>, window_params = [{transform_indices = @transform_0, window_bounds = array<i64: 8, 16>}, {pipeline_mode = #tpu.pipeline_mode<synchronous>, transform_indices = @transform_1, window_bounds = array<i64: 6, 128, 128>}, {pipeline_mode = #tpu.pipeline_mode<synchronous>, transform_indices = @transform_2, window_bounds = array<i64: 6, 1, 128>}, {transform_indices = @transform_3, window_bounds = array<i64: 8, 128>}]} {
    %c0 = arith.constant 0 : index
    %c0_0 = arith.constant 0 : index
    %0 = vector.load %arg1[%c0, %c0_0] : memref<8x16xf32, #tpu.memory_space<vmem>>, vector<8x16xf32>
    %1 = arith.truncf %0 : vector<8x16xf32> to vector<8x16xbf16>
    %c0_1 = arith.constant 0 : index
    %c0_2 = arith.constant 0 : index
    %c0_3 = arith.constant 0 : index
    %2 = vector.load %arg2[%c0_1, %c0_2, %c0_3] : memref<6x128x128xbf16, #tpu.memory_space<vmem>>, vector<1x128x128xbf16>
    %3 = vector.shape_cast %2 : vector<1x128x128xbf16> to vector<128x128xbf16>
    %4 = vector.extract_strided_slice %3 {offsets = [0, 0], sizes = [16, 128], strides = [1, 1]} : vector<128x128xbf16> to vector<16x128xbf16>
    %cst = arith.constant dense<0.000000e+00> : vector<8x128xf32>
    %5 = tpu.matmul %1, %4, %cst {dimension_numbers = #tpu.dot_dimension_numbers<[1], [0], [0], [1], [0, 0, 1, 1], [], []>} : vector<8x16xbf16>, vector<16x128xbf16>, vector<8x128xf32> -> vector<8x128xf32>
    %c0_4 = arith.constant 0 : index
    %c0_5 = arith.constant 0 : index
    %c0_6 = arith.constant 0 : index
    %6 = vector.load %arg3[%c0_4, %c0_5, %c0_6] : memref<6x1x128xf32, #tpu.memory_space<vmem>>, vector<1x1x128xf32>
    %7 = vector.shape_cast %6 : vector<1x1x128xf32> to vector<1x128xf32>
    %8 = vector.broadcast %7 : vector<1x128xf32> to vector<8x128xf32>
    %9 = arith.addf %5, %8 : vector<8x128xf32>
    %cst_7 = arith.constant 0.000000e+00 : f32
    %10 = vector.broadcast %cst_7 : f32 to vector<8x128xf32>
    %11 = arith.maximumf %9, %10 : vector<8x128xf32>
    %12 = arith.truncf %11 : vector<8x128xf32> to vector<8x128xbf16>
    %c1 = arith.constant 1 : index
    %c0_8 = arith.constant 0 : index
    %c0_9 = arith.constant 0 : index
    %13 = vector.load %arg2[%c1, %c0_8, %c0_9] : memref<6x128x128xbf16, #tpu.memory_space<vmem>>, vector<1x128x128xbf16>
    %14 = vector.shape_cast %13 : vector<1x128x128xbf16> to vector<128x128xbf16>
    %cst_10 = arith.constant dense<0.000000e+00> : vector<8x128xf32>
    %15 = tpu.matmul %12, %14, %cst_10 {dimension_numbers = #tpu.dot_dimension_numbers<[1], [0], [0], [1], [0, 0, 1, 1], [], []>} : vector<8x128xbf16>, vector<128x128xbf16>, vector<8x128xf32> -> vector<8x128xf32>
    %c1_11 = arith.constant 1 : index
    %c0_12 = arith.constant 0 : index
    %c0_13 = arith.constant 0 : index
    %16 = vector.load %arg3[%c1_11, %c0_12, %c0_13] : memref<6x1x128xf32, #tpu.memory_space<vmem>>, vector<1x1x128xf32>
    %17 = vector.shape_cast %16 : vector<1x1x128xf32> to vector<1x128xf32>
    %18 = vector.broadcast %17 : vector<1x128xf32> to vector<8x128xf32>
    %19 = arith.addf %15, %18 : vector<8x128xf32>
    %cst_14 = arith.constant 0.000000e+00 : f32
    %20 = vector.broadcast %cst_14 : f32 to vector<8x128xf32>
    %21 = arith.maximumf %19, %20 : vector<8x128xf32>
    %22 = arith.truncf %21 : vector<8x128xf32> to vector<8x128xbf16>
    %c2 = arith.constant 2 : index
    %c0_15 = arith.constant 0 : index
    %c0_16 = arith.constant 0 : index
    %23 = vector.load %arg2[%c2, %c0_15, %c0_16] : memref<6x128x128xbf16, #tpu.memory_space<vmem>>, vector<1x128x128xbf16>
    %24 = vector.shape_cast %23 : vector<1x128x128xbf16> to vector<128x128xbf16>
    %cst_17 = arith.constant dense<0.000000e+00> : vector<8x128xf32>
    %25 = tpu.matmul %22, %24, %cst_17 {dimension_numbers = #tpu.dot_dimension_numbers<[1], [0], [0], [1], [0, 0, 1, 1], [], []>} : vector<8x128xbf16>, vector<128x128xbf16>, vector<8x128xf32> -> vector<8x128xf32>
    %c2_18 = arith.constant 2 : index
    %c0_19 = arith.constant 0 : index
    %c0_20 = arith.constant 0 : index
    %26 = vector.load %arg3[%c2_18, %c0_19, %c0_20] : memref<6x1x128xf32, #tpu.memory_space<vmem>>, vector<1x1x128xf32>
    %27 = vector.shape_cast %26 : vector<1x1x128xf32> to vector<1x128xf32>
    %28 = vector.broadcast %27 : vector<1x128xf32> to vector<8x128xf32>
    %29 = arith.addf %25, %28 : vector<8x128xf32>
    %cst_21 = arith.constant 0.000000e+00 : f32
    %30 = vector.broadcast %cst_21 : f32 to vector<8x128xf32>
    %31 = arith.maximumf %29, %30 : vector<8x128xf32>
    %32 = arith.truncf %31 : vector<8x128xf32> to vector<8x128xbf16>
    %c3 = arith.constant 3 : index
    %c0_22 = arith.constant 0 : index
    %c0_23 = arith.constant 0 : index
    %33 = vector.load %arg2[%c3, %c0_22, %c0_23] : memref<6x128x128xbf16, #tpu.memory_space<vmem>>, vector<1x128x128xbf16>
    %34 = vector.shape_cast %33 : vector<1x128x128xbf16> to vector<128x128xbf16>
    %cst_24 = arith.constant dense<0.000000e+00> : vector<8x128xf32>
    %35 = tpu.matmul %32, %34, %cst_24 {dimension_numbers = #tpu.dot_dimension_numbers<[1], [0], [0], [1], [0, 0, 1, 1], [], []>} : vector<8x128xbf16>, vector<128x128xbf16>, vector<8x128xf32> -> vector<8x128xf32>
    %c3_25 = arith.constant 3 : index
    %c0_26 = arith.constant 0 : index
    %c0_27 = arith.constant 0 : index
    %36 = vector.load %arg3[%c3_25, %c0_26, %c0_27] : memref<6x1x128xf32, #tpu.memory_space<vmem>>, vector<1x1x128xf32>
    %37 = vector.shape_cast %36 : vector<1x1x128xf32> to vector<1x128xf32>
    %38 = vector.broadcast %37 : vector<1x128xf32> to vector<8x128xf32>
    %39 = arith.addf %35, %38 : vector<8x128xf32>
    %cst_28 = arith.constant 0.000000e+00 : f32
    %40 = vector.broadcast %cst_28 : f32 to vector<8x128xf32>
    %41 = arith.maximumf %39, %40 : vector<8x128xf32>
    %42 = arith.truncf %41 : vector<8x128xf32> to vector<8x128xbf16>
    %c4 = arith.constant 4 : index
    %c0_29 = arith.constant 0 : index
    %c0_30 = arith.constant 0 : index
    %43 = vector.load %arg2[%c4, %c0_29, %c0_30] : memref<6x128x128xbf16, #tpu.memory_space<vmem>>, vector<1x128x128xbf16>
    %44 = vector.shape_cast %43 : vector<1x128x128xbf16> to vector<128x128xbf16>
    %cst_31 = arith.constant dense<0.000000e+00> : vector<8x128xf32>
    %45 = tpu.matmul %42, %44, %cst_31 {dimension_numbers = #tpu.dot_dimension_numbers<[1], [0], [0], [1], [0, 0, 1, 1], [], []>} : vector<8x128xbf16>, vector<128x128xbf16>, vector<8x128xf32> -> vector<8x128xf32>
    %c4_32 = arith.constant 4 : index
    %c0_33 = arith.constant 0 : index
    %c0_34 = arith.constant 0 : index
    %46 = vector.load %arg3[%c4_32, %c0_33, %c0_34] : memref<6x1x128xf32, #tpu.memory_space<vmem>>, vector<1x1x128xf32>
    %47 = vector.shape_cast %46 : vector<1x1x128xf32> to vector<1x128xf32>
    %48 = vector.broadcast %47 : vector<1x128xf32> to vector<8x128xf32>
    %49 = arith.addf %45, %48 : vector<8x128xf32>
    %cst_35 = arith.constant 0.000000e+00 : f32
    %50 = vector.broadcast %cst_35 : f32 to vector<8x128xf32>
    %51 = arith.maximumf %49, %50 : vector<8x128xf32>
    %52 = arith.truncf %51 : vector<8x128xf32> to vector<8x128xbf16>
    %c5 = arith.constant 5 : index
    %c0_36 = arith.constant 0 : index
    %c0_37 = arith.constant 0 : index
    %53 = vector.load %arg2[%c5, %c0_36, %c0_37] : memref<6x128x128xbf16, #tpu.memory_space<vmem>>, vector<1x128x128xbf16>
    %54 = vector.shape_cast %53 : vector<1x128x128xbf16> to vector<128x128xbf16>
    %cst_38 = arith.constant dense<0.000000e+00> : vector<8x128xf32>
    %55 = tpu.matmul %52, %54, %cst_38 {dimension_numbers = #tpu.dot_dimension_numbers<[1], [0], [0], [1], [0, 0, 1, 1], [], []>} : vector<8x128xbf16>, vector<128x128xbf16>, vector<8x128xf32> -> vector<8x128xf32>
    %c5_39 = arith.constant 5 : index
    %c0_40 = arith.constant 0 : index
    %c0_41 = arith.constant 0 : index
    %56 = vector.load %arg3[%c5_39, %c0_40, %c0_41] : memref<6x1x128xf32, #tpu.memory_space<vmem>>, vector<1x1x128xf32>
    %57 = vector.shape_cast %56 : vector<1x1x128xf32> to vector<1x128xf32>
    %58 = vector.broadcast %57 : vector<1x128xf32> to vector<8x128xf32>
    %59 = arith.addf %55, %58 : vector<8x128xf32>
    %60 = arith.truncf %59 : vector<8x128xf32> to vector<8x128xbf16>
    %c0_42 = arith.constant 0 : index
    %c0_43 = arith.constant 0 : index
    %61 = vector.load %arg4[%c0_42, %c0_43] : memref<8x128xbf16, #tpu.memory_space<vmem>>, vector<8x128xbf16>
    tpu.vector_store %arg4[%c0_42, %c0_43], %60 {strides = array<i32>} : memref<8x128xbf16, #tpu.memory_space<vmem>>, vector<8x128xbf16>,
    return
  }
  func.func @transform_0(%arg0: i32) -> (i32, i32) {
    %c0_i32 = arith.constant 0 : i32
    %c0_i32_0 = arith.constant 0 : i32
    return %arg0, %c0_i32 : i32, i32
  }
  func.func @transform_1(%arg0: i32) -> (i32, i32, i32) {
    %c0_i32 = arith.constant 0 : i32
    %c0_i32_0 = arith.constant 0 : i32
    %c0_i32_1 = arith.constant 0 : i32
    %c0_i32_2 = arith.constant 0 : i32
    return %c0_i32, %c0_i32_0, %c0_i32_1 : i32, i32, i32
  }
  func.func @transform_2(%arg0: i32) -> (i32, i32, i32) {
    %c0_i32 = arith.constant 0 : i32
    %c0_i32_0 = arith.constant 0 : i32
    %c0_i32_1 = arith.constant 0 : i32
    %c0_i32_2 = arith.constant 0 : i32
    return %c0_i32, %c0_i32_0, %c0_i32_1 : i32, i32, i32
  }
  func.func @transform_3(%arg0: i32) -> (i32, i32) {
    %c0_i32 = arith.constant 0 : i32
    %c0_i32_0 = arith.constant 0 : i32
    return %arg0, %c0_i32 : i32, i32
  }
}

</mosaic_0001>

<llo_original>
// kernel: mlp_forward.1
$region0: #{mlp_forward.1}
  #allocation0 [shape = 'u32[]', space=smem, size = 0x4, offset = 0x4, fixed_abs, tag = 'smem constant byte address 0x4 - core index']
  #allocation1 [shape = 'u32[144,128]{1,0:T(1,128)}', space=vmem, size = 0x12000, scoped, tag = 'internal scratch']
  %s0 = inlined_call_operand.vmem [shape: f32[8,16], index: 0, kind: input, shape index: {}]
  %s1 = inlined_call_operand.hbm [shape: bf16[6,128,128], index: 1, kind: input, shape index: {}]
  %s2 = inlined_call_operand.vmem [shape: f32[6,1,128], index: 2, kind: input, shape index: {}]
  %s3 = inlined_call_operand.vmem [shape: bf16[8,128], index: 3, kind: output, shape index: {}]
  %s4 = sld [smem:[#allocation0]]
  $region26: #{mlp_forward.1} parent=0
    _
  %s6 = ssub.s32 1, %s4
  %s7 = scalar_select 0, %s6, %s4
  $region1: #{mlp_forward.1} parent=0
    #allocation2 [shape = 'u8[196608]{0}', space=vmem, size = 0x30000, scoped, tag = 'input window, operand 1, single buffered']
    #allocation3 [shape = 's32[1]{0}', space=sflag, size = 0x4, scoped, tag = 'scoped memory for mlp_forward.1']
    %8 = vsyncpa [#allocation3], 0
    // Predicated region
    $region2: #{mlp_forward.1} parent=1 // pred_check
      _
    $region3: #{mlp_forward.1} parent=1 // pred_check_branch
      %10 = sbr.rel (0) target = $region5
    $region4: #{mlp_forward.1} parent=1 // pred_region
      _
    $region5: #{mlp_forward.1} parent=1 // pred_fallthru
      _
    // Predicated region
    $region6: #{mlp_forward.1} parent=1 // pred_check
      _
    $region7: #{mlp_forward.1} parent=1 // pred_check_branch
      %12 = sbr.rel (0) target = $region9
    $region8: #{mlp_forward.1} parent=1 // pred_region
      %s14 = ssub.s32 6144, 6144
      %15 = vsyncadd [#allocation3], %s14
      %s16 = sshll.u32 [#allocation2], 4
      %s17 = int_to_ptr.vmem [resolvable:$true] %s16
      %22 = dma.hbm_to_vmem [thread:$0]  %s1, 6144, %s17, [#allocation3], 64, 64, 4
    $region9: #{mlp_forward.1} parent=1 // pred_fallthru
      _
    // Predicated region
    $region10: #{mlp_forward.1} parent=1 // pred_check
      _
    $region11: #{mlp_forward.1} parent=1 // pred_check_branch
      %24 = sbr.rel (0) target = $region13
    $region12: #{mlp_forward.1} parent=1 // pred_region
      _
    $region13: #{mlp_forward.1} parent=1 // pred_fallthru
      _
    // Predicated region
    $region14: #{mlp_forward.1} parent=1 // pred_check
      _
    $region15: #{mlp_forward.1} parent=1 // pred_check_branch
      %26 = sbr.rel (0) target = $region17
    $region16: #{mlp_forward.1} parent=1 // pred_region
      %27 = dma.done [#allocation3], 6144
    $region17: #{mlp_forward.1} parent=1 // pred_fallthru
      _
    %v29 = vld [vmem:[%s0] sm:$0xff]
    %v30 = vpack.c.bf16 %v29, %v29
    %v31 = vld [vmem:[#allocation2] sm:$0xf]
    %v32 = vld [vmem:[#allocation2 + $0x4] sm:$0xf]
    %v33 = vld [vmem:[%s2] sm:$0x1]
    %v35 = vlaneseq
    %v36 = vshrl.u32 %v35, 7
    %v37 = vsub.s32 0, %v36
    %v38 = vrot.slane %v33, %v37
    %v42 = vunpack.c.l.b16 %v31
    %v43 = vunpack.c.l.b16 %v32
    %v44 = vpack.c.b16 %v43, %v42
    %vm46 = vcmask 130048
    %v48 = vsel %vm46, %v30, 0
    %50 = vmatprep.subr.bf16.mxu0 0
    %51 = vmatpush1.bf16.msra.mxu0 0
    %52 = vmatprep.subr.bf16.mxu0 0
    %53 = vmatpush1.bf16.msra.mxu0 0
    %54 = vmatprep.subr.bf16.mxu0 0
    %55 = vmatpush1.bf16.msra.mxu0 0
    %56 = vmatprep.subr.bf16.mxu0 0
    %57 = vmatpush1.bf16.msra.mxu0 0
    %58 = vmatprep.subr.bf16.mxu0 0
    %59 = vmatpush1.bf16.msra.mxu0 0
    %60 = vmatprep.subr.bf16.mxu0 0
    %61 = vmatpush1.bf16.msra.mxu0 0
    %62 = vmatprep.subr.bf16.mxu0 0
    %63 = vmatpush1.bf16.msra.mxu0 0
    %64 = vmatprep.subr.bf16.mxu0 0
    %65 = vmatpush1.bf16.msra.mxu0 %v44
    %66 = vmatprep.subr.bf16.mxu0 0
    %67 = vmatpush2.bf16.msra.mxu0 0
    %68 = vmatprep.subr.bf16.mxu0 0
    %69 = vmatpush2.bf16.msra.mxu0 0
    %70 = vmatprep.subr.bf16.mxu0 0
    %71 = vmatpush2.bf16.msra.mxu0 0
    %72 = vmatprep.subr.bf16.mxu0 0
    %73 = vmatpush2.bf16.msra.mxu0 0
    %74 = vmatprep.subr.bf16.mxu0 0
    %75 = vmatpush2.bf16.msra.mxu0 0
    %76 = vmatprep.subr.bf16.mxu0 0
    %77 = vmatpush2.bf16.msra.mxu0 0
    %78 = vmatprep.subr.bf16.mxu0 0
    %79 = vmatpush2.bf16.msra.mxu0 0
    %80 = vmatprep.subr.bf16.mxu0 0
    %81 = vmatpush2.bf16.msra.mxu0 0
    %82 = vmatprep.mubr.bf16.mxu0 0
    %83 = vmatmul.mubr.bf16.gmra.mxu0 %v48
    %v84 = vpop.f32.mrf.mxu0
    %v85 = vadd.f32 %v38, %v84
    %v86 = vpop.f32.mrf.mxu0
    %v87 = vpop.f32.mrf.mxu0
    %v88 = vpop.f32.mrf.mxu0
    %89 = vdwg.mxu0
    %v90 = vmax.f32 %v85, 0.0
    %v91 = vpack.c.bf16 %v90, %v90
    %s92 = scalar_lea.vmem [#allocation2], 64
    %v93 = vld [vmem:[%s92] sm:$0xf]
    %v94 = vld [vmem:[%s92 + $0x4] sm:$0xf]
    %v95 = vld [vmem:[%s92 + $0x8] sm:$0xf]
    %v96 = vld [vmem:[%s92 + $0xc] sm:$0xf]
    %v97 = vld [vmem:[%s92 + $0x10] sm:$0xf]
    %v98 = vld [vmem:[%s92 + $0x14] sm:$0xf]
    %v99 = vld [vmem:[%s92 + $0x18] sm:$0xf]
    %v100 = vld [vmem:[%s92 + $0x1c] sm:$0xf]
    %v101 = vld [vmem:[%s92 + $0x20] sm:$0xf]
    %v102 = vld [vmem:[%s92 + $0x24] sm:$0xf]
    %v103 = vld [vmem:[%s92 + $0x28] sm:$0xf]
    %v104 = vld [vmem:[%s92 + $0x2c] sm:$0xf]
    %v105 = vld [vmem:[%s92 + $0x30] sm:$0xf]
    %v106 = vld [vmem:[%s92 + $0x34] sm:$0xf]
    %v107 = vld [vmem:[%s92 + $0x38] sm:$0xf]
    %v108 = vld [vmem:[%s92 + $0x3c] sm:$0xf]
    %s109 = scalar_lea.vmem %s2, 1
    %v110 = vld [vmem:[%s109] sm:$0x1]
    %v112 = vlaneseq
    %v113 = vshrl.u32 %v112, 7
    %v114 = vsub.s32 0, %v113
    %v115 = vrot.slane %v110, %v114
    %v133 = vunpack.c.l.b16 %v93
    %v134 = vunpack.c.l.b16 %v94
    %v135 = vunpack.c.l.b16 %v95
    %v136 = vunpack.c.l.b16 %v96
    %v137 = vunpack.c.l.b16 %v97
    %v138 = vunpack.c.l.b16 %v98
    %v139 = vunpack.c.l.b16 %v99
    %v140 = vunpack.c.l.b16 %v100
    %v141 = vunpack.c.l.b16 %v101
    %v142 = vunpack.c.l.b16 %v102
    %v143 = vunpack.c.l.b16 %v103
    %v144 = vunpack.c.l.b16 %v104
    %v145 = vunpack.c.l.b16 %v105
    %v146 = vunpack.c.l.b16 %v106
    %v147 = vunpack.c.l.b16 %v107
    %v148 = vunpack.c.l.b16 %v108
    %v149 = vpack.c.b16 %v134, %v133
    %v150 = vpack.c.b16 %v136, %v135
    %v151 = vpack.c.b16 %v138, %v137
    %v152 = vpack.c.b16 %v140, %v139
    %v153 = vpack.c.b16 %v142, %v141
    %v154 = vpack.c.b16 %v144, %v143
    %v155 = vpack.c.b16 %v146, %v145
    %v156 = vpack.c.b16 %v148, %v147
    %165 = vmatprep.subr.bf16.mxu0 0
    %166 = vmatpush1.bf16.msra.mxu0 %v156
    %167 = vmatprep.subr.bf16.mxu0 0
    %168 = vmatpush1.bf16.msra.mxu0 %v155
    %169 = vmatprep.subr.bf16.mxu0 0
    %170 = vmatpush1.bf16.msra.mxu0 %v154
    %171 = vmatprep.subr.bf16.mxu0 0
    %172 = vmatpush1.bf16.msra.mxu0 %v153
    %173 = vmatprep.subr.bf16.mxu0 0
    %174 = vmatpush1.bf16.msra.mxu0 %v152
    %175 = vmatprep.subr.bf16.mxu0 0
    %176 = vmatpush1.bf16.msra.mxu0 %v151
    %177 = vmatprep.subr.bf16.mxu0 0
    %178 = vmatpush1.bf16.msra.mxu0 %v150
    %179 = vmatprep.subr.bf16.mxu0 0
    %180 = vmatpush1.bf16.msra.mxu0 %v149
    %181 = vmatprep.subr.bf16.mxu0 0
    %182 = vmatpush2.bf16.msra.mxu0 0
    %183 = vmatprep.subr.bf16.mxu0 0
    %184 = vmatpush2.bf16.msra.mxu0 0
    %185 = vmatprep.subr.bf16.mxu0 0
    %186 = vmatpush2.bf16.msra.mxu0 0
    %187 = vmatprep.subr.bf16.mxu0 0
    %188 = vmatpush2.bf16.msra.mxu0 0
    %189 = vmatprep.subr.bf16.mxu0 0
    %190 = vmatpush2.bf16.msra.mxu0 0
    %191 = vmatprep.subr.bf16.mxu0 0
    %192 = vmatpush2.bf16.msra.mxu0 0
    %193 = vmatprep.subr.bf16.mxu0 0
    %194 = vmatpush2.bf16.msra.mxu0 0
    %195 = vmatprep.subr.bf16.mxu0 0
    %196 = vmatpush2.bf16.msra.mxu0 0
    %197 = vmatprep.mubr.bf16.mxu0 0
    %198 = vmatmul.mubr.bf16.gmra.mxu0 %v91
    %v199 = vpop.f32.mrf.mxu0
    %v200 = vadd.f32 %v115, %v199
    %v201 = vpop.f32.mrf.mxu0
    %v202 = vpop.f32.mrf.mxu0
    %v203 = vpop.f32.mrf.mxu0
    %204 = vdwg.mxu0
    %v205 = vmax.f32 %v200, 0.0
    %v206 = vpack.c.bf16 %v205, %v205
    %s207 = scalar_lea.vmem [#allocation2], 128
    %v208 = vld [vmem:[%s207] sm:$0xf]
    %v209 = vld [vmem:[%s207 + $0x4] sm:$0xf]
    %v210 = vld [vmem:[%s207 + $0x8] sm:$0xf]
    %v211 = vld [vmem:[%s207 + $0xc] sm:$0xf]
    %v212 = vld [vmem:[%s207 + $0x10] sm:$0xf]
    %v213 = vld [vmem:[%s207 + $0x14] sm:$0xf]
    %v214 = vld [vmem:[%s207 + $0x18] sm:$0xf]
    %v215 = vld [vmem:[%s207 + $0x1c] sm:$0xf]
    %v216 = vld [vmem:[%s207 + $0x20] sm:$0xf]
    %v217 = vld [vmem:[%s207 + $0x24] sm:$0xf]
    %v218 = vld [vmem:[%s207 + $0x28] sm:$0xf]
    %v219 = vld [vmem:[%s207 + $0x2c] sm:$0xf]
    %v220 = vld [vmem:[%s207 + $0x30] sm:$0xf]
    %v221 = vld [vmem:[%s207 + $0x34] sm:$0xf]
    %v222 = vld [vmem:[%s207 + $0x38] sm:$0xf]
    %v223 = vld [vmem:[%s207 + $0x3c] sm:$0xf]
    %s224 = scalar_lea.vmem %s2, 2
    %v225 = vld [vmem:[%s224] sm:$0x1]
    %v227 = vlaneseq
    %v228 = vshrl.u32 %v227, 7
    %v229 = vsub.s32 0, %v228
    %v230 = vrot.slane %v225, %v229
    %v248 = vunpack.c.l.b16 %v208
    %v249 = vunpack.c.l.b16 %v209
    %v250 = vunpack.c.l.b16 %v210
    %v251 = vunpack.c.l.b16 %v211
    %v252 = vunpack.c.l.b16 %v212
    %v253 = vunpack.c.l.b16 %v213
    %v254 = vunpack.c.l.b16 %v214
    %v255 = vunpack.c.l.b16 %v215
    %v256 = vunpack.c.l.b16 %v216
    %v257 = vunpack.c.l.b16 %v217
    %v258 = vunpack.c.l.b16 %v218
    %v259 = vunpack.c.l.b16 %v219
    %v260 = vunpack.c.l.b16 %v220
    %v261 = vunpack.c.l.b16 %v221
    %v262 = vunpack.c.l.b16 %v222
    %v263 = vunpack.c.l.b16 %v223
    %v264 = vpack.c.b16 %v249, %v248
    %v265 = vpack.c.b16 %v251, %v250
    %v266 = vpack.c.b16 %v253, %v252
    %v267 = vpack.c.b16 %v255, %v254
    %v268 = vpack.c.b16 %v257, %v256
    %v269 = vpack.c.b16 %v259, %v258
    %v270 = vpack.c.b16 %v261, %v260
    %v271 = vpack.c.b16 %v263, %v262
    %280 = vmatprep.subr.bf16.mxu0 0
    %281 = vmatpush1.bf16.msra.mxu0 %v271
    %282 = vmatprep.subr.bf16.mxu0 0
    %283 = vmatpush1.bf16.msra.mxu0 %v270
    %284 = vmatprep.subr.bf16.mxu0 0
    %285 = vmatpush1.bf16.msra.mxu0 %v269
    %286 = vmatprep.subr.bf16.mxu0 0
    %287 = vmatpush1.bf16.msra.mxu0 %v268
    %288 = vmatprep.subr.bf16.mxu0 0
    %289 = vmatpush1.bf16.msra.mxu0 %v267
    %290 = vmatprep.subr.bf16.mxu0 0
    %291 = vmatpush1.bf16.msra.mxu0 %v266
    %292 = vmatprep.subr.bf16.mxu0 0
    %293 = vmatpush1.bf16.msra.mxu0 %v265
    %294 = vmatprep.subr.bf16.mxu0 0
    %295 = vmatpush1.bf16.msra.mxu0 %v264
    %296 = vmatprep.subr.bf16.mxu0 0
    %297 = vmatpush2.bf16.msra.mxu0 0
    %298 = vmatprep.subr.bf16.mxu0 0
    %299 = vmatpush2.bf16.msra.mxu0 0
    %300 = vmatprep.subr.bf16.mxu0 0
    %301 = vmatpush2.bf16.msra.mxu0 0
    %302 = vmatprep.subr.bf16.mxu0 0
    %303 = vmatpush2.bf16.msra.mxu0 0
    %304 = vmatprep.subr.bf16.mxu0 0
    %305 = vmatpush2.bf16.msra.mxu0 0
    %306 = vmatprep.subr.bf16.mxu0 0
    %307 = vmatpush2.bf16.msra.mxu0 0
    %308 = vmatprep.subr.bf16.mxu0 0
    %309 = vmatpush2.bf16.msra.mxu0 0
    %310 = vmatprep.subr.bf16.mxu0 0
    %311 = vmatpush2.bf16.msra.mxu0 0
    %312 = vmatprep.mubr.bf16.mxu0 0
    %313 = vmatmul.mubr.bf16.gmra.mxu0 %v206
    %v314 = vpop.f32.mrf.mxu0
    %v315 = vadd.f32 %v230, %v314
    %v316 = vpop.f32.mrf.mxu0
    %v317 = vpop.f32.mrf.mxu0
    %v318 = vpop.f32.mrf.mxu0
    %319 = vdwg.mxu0
    %v320 = vmax.f32 %v315, 0.0
    %v321 = vpack.c.bf16 %v320, %v320
    %s322 = scalar_lea.vmem [#allocation2], 192
    %v323 = vld [vmem:[%s322] sm:$0xf]
    %v324 = vld [vmem:[%s322 + $0x4] sm:$0xf]
    %v325 = vld [vmem:[%s322 + $0x8] sm:$0xf]
    %v326 = vld [vmem:[%s322 + $0xc] sm:$0xf]
    %v327 = vld [vmem:[%s322 + $0x10] sm:$0xf]
    %v328 = vld [vmem:[%s322 + $0x14] sm:$0xf]
    %v329 = vld [vmem:[%s322 + $0x18] sm:$0xf]
    %v330 = vld [vmem:[%s322 + $0x1c] sm:$0xf]
    %v331 = vld [vmem:[%s322 + $0x20] sm:$0xf]
    %v332 = vld [vmem:[%s322 + $0x24] sm:$0xf]
    %v333 = vld [vmem:[%s322 + $0x28] sm:$0xf]
    %v334 = vld [vmem:[%s322 + $0x2c] sm:$0xf]
    %v335 = vld [vmem:[%s322 + $0x30] sm:$0xf]
    %v336 = vld [vmem:[%s322 + $0x34] sm:$0xf]
    %v337 = vld [vmem:[%s322 + $0x38] sm:$0xf]
    %v338 = vld [vmem:[%s322 + $0x3c] sm:$0xf]
    %s339 = scalar_lea.vmem %s2, 3
    %v340 = vld [vmem:[%s339] sm:$0x1]
    %v342 = vlaneseq
    %v343 = vshrl.u32 %v342, 7
    %v344 = vsub.s32 0, %v343
    %v345 = vrot.slane %v340, %v344
    %v363 = vunpack.c.l.b16 %v323
    %v364 = vunpack.c.l.b16 %v324
    %v365 = vunpack.c.l.b16 %v325
    %v366 = vunpack.c.l.b16 %v326
    %v367 = vunpack.c.l.b16 %v327
    %v368 = vunpack.c.l.b16 %v328
    %v369 = vunpack.c.l.b16 %v329
    %v370 = vunpack.c.l.b16 %v330
    %v371 = vunpack.c.l.b16 %v331
    %v372 = vunpack.c.l.b16 %v332
    %v373 = vunpack.c.l.b16 %v333
    %v374 = vunpack.c.l.b16 %v334
    %v375 = vunpack.c.l.b16 %v335
    %v376 = vunpack.c.l.b16 %v336
    %v377 = vunpack.c.l.b16 %v337
    %v378 = vunpack.c.l.b16 %v338
    %v379 = vpack.c.b16 %v364, %v363
    %v380 = vpack.c.b16 %v366, %v365
    %v381 = vpack.c.b16 %v368, %v367
    %v382 = vpack.c.b16 %v370, %v369
    %v383 = vpack.c.b16 %v372, %v371
    %v384 = vpack.c.b16 %v374, %v373
    %v385 = vpack.c.b16 %v376, %v375
    %v386 = vpack.c.b16 %v378, %v377
    %395 = vmatprep.subr.bf16.mxu0 0
    %396 = vmatpush1.bf16.msra.mxu0 %v386
    %397 = vmatprep.subr.bf16.mxu0 0
    %398 = vmatpush1.bf16.msra.mxu0 %v385
    %399 = vmatprep.subr.bf16.mxu0 0
    %400 = vmatpush1.bf16.msra.mxu0 %v384
    %401 = vmatprep.subr.bf16.mxu0 0
    %402 = vmatpush1.bf16.msra.mxu0 %v383
    %403 = vmatprep.subr.bf16.mxu0 0
    %404 = vmatpush1.bf16.msra.mxu0 %v382
    %405 = vmatprep.subr.bf16.mxu0 0
    %406 = vmatpush1.bf16.msra.mxu0 %v381
    %407 = vmatprep.subr.bf16.mxu0 0
    %408 = vmatpush1.bf16.msra.mxu0 %v380
    %409 = vmatprep.subr.bf16.mxu0 0
    %410 = vmatpush1.bf16.msra.mxu0 %v379
    %411 = vmatprep.subr.bf16.mxu0 0
    %412 = vmatpush2.bf16.msra.mxu0 0
    %413 = vmatprep.subr.bf16.mxu0 0
    %414 = vmatpush2.bf16.msra.mxu0 0
    %415 = vmatprep.subr.bf16.mxu0 0
    %416 = vmatpush2.bf16.msra.mxu0 0
    %417 = vmatprep.subr.bf16.mxu0 0
    %418 = vmatpush2.bf16.msra.mxu0 0
    %419 = vmatprep.subr.bf16.mxu0 0
    %420 = vmatpush2.bf16.msra.mxu0 0
    %421 = vmatprep.subr.bf16.mxu0 0
    %422 = vmatpush2.bf16.msra.mxu0 0
    %423 = vmatprep.subr.bf16.mxu0 0
    %424 = vmatpush2.bf16.msra.mxu0 0
    %425 = vmatprep.subr.bf16.mxu0 0
    %426 = vmatpush2.bf16.msra.mxu0 0
    %427 = vmatprep.mubr.bf16.mxu0 0
    %428 = vmatmul.mubr.bf16.gmra.mxu0 %v321
    %v429 = vpop.f32.mrf.mxu0
    %v430 = vadd.f32 %v345, %v429
    %v431 = vpop.f32.mrf.mxu0
    %v432 = vpop.f32.mrf.mxu0
    %v433 = vpop.f32.mrf.mxu0
    %434 = vdwg.mxu0
    %v435 = vmax.f32 %v430, 0.0
    %v436 = vpack.c.bf16 %v435, %v435
    %s437 = scalar_lea.vmem [#allocation2], 256
    %v438 = vld [vmem:[%s437] sm:$0xf]
    %v439 = vld [vmem:[%s437 + $0x4] sm:$0xf]
    %v440 = vld [vmem:[%s437 + $0x8] sm:$0xf]
    %v441 = vld [vmem:[%s437 + $0xc] sm:$0xf]
    %v442 = vld [vmem:[%s437 + $0x10] sm:$0xf]
    %v443 = vld [vmem:[%s437 + $0x14] sm:$0xf]
    %v444 = vld [vmem:[%s437 + $0x18] sm:$0xf]
    %v445 = vld [vmem:[%s437 + $0x1c] sm:$0xf]
    %v446 = vld [vmem:[%s437 + $0x20] sm:$0xf]
    %v447 = vld [vmem:[%s437 + $0x24] sm:$0xf]
    %v448 = vld [vmem:[%s437 + $0x28] sm:$0xf]
    %v449 = vld [vmem:[%s437 + $0x2c] sm:$0xf]
    %v450 = vld [vmem:[%s437 + $0x30] sm:$0xf]
    %v451 = vld [vmem:[%s437 + $0x34] sm:$0xf]
    %v452 = vld [vmem:[%s437 + $0x38] sm:$0xf]
    %v453 = vld [vmem:[%s437 + $0x3c] sm:$0xf]
    %s454 = scalar_lea.vmem %s2, 4
    %v455 = vld [vmem:[%s454] sm:$0x1]
    %v457 = vlaneseq
    %v458 = vshrl.u32 %v457, 7
    %v459 = vsub.s32 0, %v458
    %v460 = vrot.slane %v455, %v459
    %v478 = vunpack.c.l.b16 %v438
    %v479 = vunpack.c.l.b16 %v439
    %v480 = vunpack.c.l.b16 %v440
    %v481 = vunpack.c.l.b16 %v441
    %v482 = vunpack.c.l.b16 %v442
    %v483 = vunpack.c.l.b16 %v443
    %v484 = vunpack.c.l.b16 %v444
    %v485 = vunpack.c.l.b16 %v445
    %v486 = vunpack.c.l.b16 %v446
    %v487 = vunpack.c.l.b16 %v447
    %v488 = vunpack.c.l.b16 %v448
    %v489 = vunpack.c.l.b16 %v449
    %v490 = vunpack.c.l.b16 %v450
    %v491 = vunpack.c.l.b16 %v451
    %v492 = vunpack.c.l.b16 %v452
    %v493 = vunpack.c.l.b16 %v453
    %v494 = vpack.c.b16 %v479, %v478
    %v495 = vpack.c.b16 %v481, %v480
    %v496 = vpack.c.b16 %v483, %v482
    %v497 = vpack.c.b16 %v485, %v484
    %v498 = vpack.c.b16 %v487, %v486
    %v499 = vpack.c.b16 %v489, %v488
    %v500 = vpack.c.b16 %v491, %v490
    %v501 = vpack.c.b16 %v493, %v492
    %510 = vmatprep.subr.bf16.mxu0 0
    %511 = vmatpush1.bf16.msra.mxu0 %v501
    %512 = vmatprep.subr.bf16.mxu0 0
    %513 = vmatpush1.bf16.msra.mxu0 %v500
    %514 = vmatprep.subr.bf16.mxu0 0
    %515 = vmatpush1.bf16.msra.mxu0 %v499
    %516 = vmatprep.subr.bf16.mxu0 0
    %517 = vmatpush1.bf16.msra.mxu0 %v498
    %518 = vmatprep.subr.bf16.mxu0 0
    %519 = vmatpush1.bf16.msra.mxu0 %v497
    %520 = vmatprep.subr.bf16.mxu0 0
    %521 = vmatpush1.bf16.msra.mxu0 %v496
    %522 = vmatprep.subr.bf16.mxu0 0
    %523 = vmatpush1.bf16.msra.mxu0 %v495
    %524 = vmatprep.subr.bf16.mxu0 0
    %525 = vmatpush1.bf16.msra.mxu0 %v494
    %526 = vmatprep.subr.bf16.mxu0 0
    %527 = vmatpush2.bf16.msra.mxu0 0
    %528 = vmatprep.subr.bf16.mxu0 0
    %529 = vmatpush2.bf16.msra.mxu0 0
    %530 = vmatprep.subr.bf16.mxu0 0
    %531 = vmatpush2.bf16.msra.mxu0 0
    %532 = vmatprep.subr.bf16.mxu0 0
    %533 = vmatpush2.bf16.msra.mxu0 0
    %534 = vmatprep.subr.bf16.mxu0 0
    %535 = vmatpush2.bf16.msra.mxu0 0
    %536 = vmatprep.subr.bf16.mxu0 0
    %537 = vmatpush2.bf16.msra.mxu0 0
    %538 = vmatprep.subr.bf16.mxu0 0
    %539 = vmatpush2.bf16.msra.mxu0 0
    %540 = vmatprep.subr.bf16.mxu0 0
    %541 = vmatpush2.bf16.msra.mxu0 0
    %542 = vmatprep.mubr.bf16.mxu0 0
    %543 = vmatmul.mubr.bf16.gmra.mxu0 %v436
    %v544 = vpop.f32.mrf.mxu0
    %v545 = vadd.f32 %v460, %v544
    %v546 = vpop.f32.mrf.mxu0
    %v547 = vpop.f32.mrf.mxu0
    %v548 = vpop.f32.mrf.mxu0
    %549 = vdwg.mxu0
    %v550 = vmax.f32 %v545, 0.0
    %v551 = vpack.c.bf16 %v550, %v550
    %s552 = scalar_lea.vmem [#allocation2], 320
    %v553 = vld [vmem:[%s552] sm:$0xf]
    %v554 = vld [vmem:[%s552 + $0x4] sm:$0xf]
    %v555 = vld [vmem:[%s552 + $0x8] sm:$0xf]
    %v556 = vld [vmem:[%s552 + $0xc] sm:$0xf]
    %v557 = vld [vmem:[%s552 + $0x10] sm:$0xf]
    %v558 = vld [vmem:[%s552 + $0x14] sm:$0xf]
    %v559 = vld [vmem:[%s552 + $0x18] sm:$0xf]
    %v560 = vld [vmem:[%s552 + $0x1c] sm:$0xf]
    %v561 = vld [vmem:[%s552 + $0x20] sm:$0xf]
    %v562 = vld [vmem:[%s552 + $0x24] sm:$0xf]
    %v563 = vld [vmem:[%s552 + $0x28] sm:$0xf]
    %v564 = vld [vmem:[%s552 + $0x2c] sm:$0xf]
    %v565 = vld [vmem:[%s552 + $0x30] sm:$0xf]
    %v566 = vld [vmem:[%s552 + $0x34] sm:$0xf]
    %v567 = vld [vmem:[%s552 + $0x38] sm:$0xf]
    %v568 = vld [vmem:[%s552 + $0x3c] sm:$0xf]
    %s569 = scalar_lea.vmem %s2, 5
    %v570 = vld [vmem:[%s569] sm:$0x1]
    %v572 = vlaneseq
    %v573 = vshrl.u32 %v572, 7
    %v574 = vsub.s32 0, %v573
    %v575 = vrot.slane %v570, %v574
    %v593 = vunpack.c.l.b16 %v553
    %v594 = vunpack.c.l.b16 %v554
    %v595 = vunpack.c.l.b16 %v555
    %v596 = vunpack.c.l.b16 %v556
    %v597 = vunpack.c.l.b16 %v557
    %v598 = vunpack.c.l.b16 %v558
    %v599 = vunpack.c.l.b16 %v559
    %v600 = vunpack.c.l.b16 %v560
    %v601 = vunpack.c.l.b16 %v561
    %v602 = vunpack.c.l.b16 %v562
    %v603 = vunpack.c.l.b16 %v563
    %v604 = vunpack.c.l.b16 %v564
    %v605 = vunpack.c.l.b16 %v565
    %v606 = vunpack.c.l.b16 %v566
    %v607 = vunpack.c.l.b16 %v567
    %v608 = vunpack.c.l.b16 %v568
    %v609 = vpack.c.b16 %v594, %v593
    %v610 = vpack.c.b16 %v596, %v595
    %v611 = vpack.c.b16 %v598, %v597
    %v612 = vpack.c.b16 %v600, %v599
    %v613 = vpack.c.b16 %v602, %v601
    %v614 = vpack.c.b16 %v604, %v603
    %v615 = vpack.c.b16 %v606, %v605
    %v616 = vpack.c.b16 %v608, %v607
    %625 = vmatprep.subr.bf16.mxu0 0
    %626 = vmatpush1.bf16.msra.mxu0 %v616
    %627 = vmatprep.subr.bf16.mxu0 0
    %628 = vmatpush1.bf16.msra.mxu0 %v615
    %629 = vmatprep.subr.bf16.mxu0 0
    %630 = vmatpush1.bf16.msra.mxu0 %v614
    %631 = vmatprep.subr.bf16.mxu0 0
    %632 = vmatpush1.bf16.msra.mxu0 %v613
    %633 = vmatprep.subr.bf16.mxu0 0
    %634 = vmatpush1.bf16.msra.mxu0 %v612
    %635 = vmatprep.subr.bf16.mxu0 0
    %636 = vmatpush1.bf16.msra.mxu0 %v611
    %637 = vmatprep.subr.bf16.mxu0 0
    %638 = vmatpush1.bf16.msra.mxu0 %v610
    %639 = vmatprep.subr.bf16.mxu0 0
    %640 = vmatpush1.bf16.msra.mxu0 %v609
    %641 = vmatprep.subr.bf16.mxu0 0
    %642 = vmatpush2.bf16.msra.mxu0 0
    %643 = vmatprep.subr.bf16.mxu0 0
    %644 = vmatpush2.bf16.msra.mxu0 0
    %645 = vmatprep.subr.bf16.mxu0 0
    %646 = vmatpush2.bf16.msra.mxu0 0
    %647 = vmatprep.subr.bf16.mxu0 0
    %648 = vmatpush2.bf16.msra.mxu0 0
    %649 = vmatprep.subr.bf16.mxu0 0
    %650 = vmatpush2.bf16.msra.mxu0 0
    %651 = vmatprep.subr.bf16.mxu0 0
    %652 = vmatpush2.bf16.msra.mxu0 0
    %653 = vmatprep.subr.bf16.mxu0 0
    %654 = vmatpush2.bf16.msra.mxu0 0
    %655 = vmatprep.subr.bf16.mxu0 0
    %656 = vmatpush2.bf16.msra.mxu0 0
    %657 = vmatprep.mubr.bf16.mxu0 0
    %658 = vmatmul.mubr.bf16.gmra.mxu0 %v551
    %v659 = vpop.f32.mrf.mxu0
    %v660 = vadd.f32 %v575, %v659
    %v661 = vpop.f32.mrf.mxu0
    %v662 = vpop.f32.mrf.mxu0
    %v663 = vpop.f32.mrf.mxu0
    %664 = vdwg.mxu0
    %v665 = vpack.c.bf16 %v660, %v660
    %666 = vst [vmem:[%s3] sm:$0xf] %v665
    // Predicated region
    $region18: #{mlp_forward.1} parent=1 // pred_check
      _
    $region19: #{mlp_forward.1} parent=1 // pred_check_branch
      %668 = sbr.rel (0) target = $region21
    $region20: #{mlp_forward.1} parent=1 // pred_region
      _
    $region21: #{mlp_forward.1} parent=1 // pred_fallthru
      _
    // Predicated region
    $region22: #{mlp_forward.1} parent=1 // pred_check
      _
    $region23: #{mlp_forward.1} parent=1 // pred_check_branch
      %670 = sbr.rel (0) target = $region25
    $region24: #{mlp_forward.1} parent=1 // pred_region
      _
    $region25: #{mlp_forward.1} parent=1 // pred_fallthru
      _
    %671 = vsyncpa [#allocation3], 1

</llo_original>
